<compile_context>
chip_gen: v7x
topology: tpu7x:2x2x1
jax: 0.10.0
libtpu: 0.0.40
codegen_flags: <defaults>
</compile_context>

<pallas_src>
import functools

import jax
import jax.numpy as jnp
from jax.experimental import pallas as pl
from jax.experimental.pallas import tpu as pltpu


def _conv_kernel(x_ref, wk_ref, b_ref, o_ref, *, padding, img_h):
    # x_ref : (G*H, W*C)       G images stacked along the matmul M dimension
    # wk_ref: (W*C, KH*Wo*O)   banded weight matrix, all KH kernel rows side by side
    # b_ref : (1, Wo*O)        bias replicated per output column
    # o_ref : (G*Ho, Wo*O)     lane-dense output slab (Wo*O == 128 at the toy shape)
    GHo, WoO = o_ref.shape
    KH = wk_ref.shape[1] // WoO
    Ho = img_h                                        # "same" conv in H (asserted in wrapper)

    # One MXU matmul covering all G images and all KH kernel rows.
    y = jnp.dot(x_ref[...], wk_ref[...], preferred_element_type=jnp.float32)  # (G*H, KH*WoO)

    # Accumulator initialized with the broadcast bias (no separate bias pass).
    acc = jnp.broadcast_to(b_ref[...].astype(jnp.float32), (GHo, WoO))

    # Per-image local row index for the boundary masks (valid even after the
    # global roll wraps rows across image boundaries, since out-of-support rows
    # are exactly the masked ones for a same-conv).
    row = jax.lax.broadcasted_iota(jnp.int32, (GHo, WoO), 0)
    if GHo == img_h:
        lrow = row
    elif (img_h & (img_h - 1)) == 0:                  # power of two -> cheap AND
        lrow = row & (img_h - 1)
    else:
        lrow = row % img_h

    # Output row i accumulates the contribution of input row (i - padding + kh):
    # a sublane roll (XLU slot, cheap) plus a single-sided boundary mask where needed.
    for kh in range(KH):
        yk = y[:, kh * WoO:(kh + 1) * WoO]            # 128-aligned lane slice
        shift = (padding - kh) % GHo
        if shift != 0:
            yk = pltpu.roll(yk, shift=shift, axis=0)
        lo = max(padding - kh, 0)
        hi = min(img_h - 1 + padding - kh, Ho - 1)
        if lo == 0 and hi == Ho - 1:
            acc = acc + yk
        elif hi == Ho - 1:
            acc = acc + jnp.where(lrow >= lo, yk, 0.0)
        elif lo == 0:
            acc = acc + jnp.where(lrow <= hi, yk, 0.0)
        else:
            acc = acc + jnp.where((lrow >= lo) & (lrow <= hi), yk, 0.0)

    o_ref[...] = acc.astype(o_ref.dtype)


def prepare_conv_params(weight, bias, *, img_w, stride=1, padding=1):
    """Precompute (once per weight update) the banded weight matrix and bias row.

    wk[w*C + c, kh*Wo*O + j*O + o] = weight[o, c, kh, w - j + padding]
    (zero whenever the tap falls outside the filter support), absorbing the
    W-direction zero padding.  b_row[0, j*O + o] = bias[o].
    """
    O, C, KH, KW = weight.shape
    W = img_w
    Wo = (W + 2 * padding - KW) // stride + 1
    sel = (jnp.arange(W)[None, :, None]
           == jnp.arange(Wo)[None, None, :] - padding + jnp.arange(KW)[:, None, None]
           ).astype(weight.dtype)                                # (KW, W, Wo)
    w_t = jnp.transpose(weight, (2, 3, 1, 0))                    # (KH, KW, C, O)
    wk = jnp.einsum("kwj,hkco->hwcjo", sel, w_t)                 # (KH, W, C, Wo, O)
    wk = wk.reshape(KH, W * C, Wo * O).transpose(1, 0, 2).reshape(W * C, KH * Wo * O)
    b_row = jnp.tile(bias, Wo).reshape(1, Wo * O)
    return wk, b_row


def _tensorcores_per_chip():
    """Best-effort TensorCore count per chip (v7x/megacore -> 2, v5e/v6e -> 1)."""
    try:
        kind = jax.devices()[0].device_kind.lower()
    except Exception:
        return 1
    for tag in ("v7", "v4", "v3"):
        if tag in kind:
            return 2
    return 1


@functools.partial(jax.jit,
                   static_argnames=("stride", "padding", "out_channels", "images_per_step"))
def simple_net_forward(x, wk, b_row, *, stride=1, padding=1, out_channels=8,
                       images_per_step=1):
    """Equivalent of SimpleNet.forward: x (N, C, H, W) -> conv1(x) (N, O, Ho, Wo)."""
    N, C, H, W = x.shape
    WC = W * C
    WoO = b_row.shape[1]
    KH = wk.shape[1] // WoO
    Wo = WoO // out_channels
    assert stride == 1, "kernel implemented for stride=1 (module default)"
    Ho = (H + 2 * padding - KH) // stride + 1
    assert Ho == H, "kernel specialized for 'same' conv in H (stride=1, pad=(KH-1)//2)"

    G = images_per_step
    assert N % G == 0
    grid_n = N // G

    # Input: NCHW -> (N*H, W*C) with lane index w*C + c.  No explicit zero pad.
    # (The transpose is only needed because the module API is NCHW; a producer
    # already in NHWC could feed the kernel directly.)
    x2d = jnp.transpose(x, (0, 2, 3, 1)).reshape(N * H, WC)

    out2d = pl.pallas_call(
        functools.partial(_conv_kernel, padding=padding, img_h=H),
        out_shape=jax.ShapeDtypeStruct((N * Ho, WoO), x.dtype),
        grid=(grid_n,),
        in_specs=[
            pl.BlockSpec((G * H, WC), lambda n: (n, 0)),
            pl.BlockSpec((WC, KH * WoO), lambda n: (0, 0)),
            pl.BlockSpec((1, WoO), lambda n: (0, 0)),
        ],
        out_specs=pl.BlockSpec((G * Ho, WoO), lambda n: (n, 0)),
        compiler_params=pltpu.CompilerParams(
            dimension_semantics=("parallel",)),
    )(x2d, wk, b_row)

    # (N*Ho, Wo*O) -> NCHW (required only because the module's API is NCHW).
    return jnp.transpose(out2d.reshape(N, Ho, Wo, out_channels), (0, 3, 1, 2))


if __name__ == "__main__":
    # Module hyper-parameters (small, consistent with the PyTorch module).
    in_channels, out_channels = 4, 8
    kernel_size, stride_, padding_ = 3, 1, 1
    N, H, W = 2, 16, 16

    key = jax.random.PRNGKey(0)
    kx, kw, kb = jax.random.split(key, 3)

    x = jax.random.normal(kx, (N, in_channels, H, W), dtype=jnp.float32)
    # Deterministic synthetic parameters (same shapes as nn.Conv2d's weight/bias).
    fan_in = in_channels * kernel_size * kernel_size
    bound = 1.0 / (fan_in ** 0.5)
    weight = jax.random.uniform(kw, (out_channels, in_channels, kernel_size, kernel_size),
                                minval=-bound, maxval=bound, dtype=jnp.float32)
    bias = jax.random.uniform(kb, (out_channels,),
                              minval=-bound, maxval=bound, dtype=jnp.float32)

    # Precompute the banded weight matrix / bias row ONCE (per weight update).
    wk, b_row = prepare_conv_params(weight, bias, img_w=W, stride=stride_, padding=padding_)
    wk, b_row = jax.block_until_ready((wk, b_row))

    # Grid choice: one image per TensorCore on multi-TC chips (v7x), otherwise
    # fold the whole batch into a single grid step / single matmul (v5e/v6e).
    cores = _tensorcores_per_chip()
    grid_n = cores if (cores <= N and N % cores == 0) else N
    images_per_step = N // grid_n

    out = simple_net_forward(x, wk, b_row, stride=stride_, padding=padding_,
                             out_channels=out_channels, images_per_step=images_per_step)
    out = jax.block_until_ready(out)

    # Cross-check against XLA's conv (pure-JAX reference).
    ref = jax.lax.conv_general_dilated(
        x, weight, window_strides=(stride_, stride_),
        padding=((padding_, padding_), (padding_, padding_)),
        dimension_numbers=("NCHW", "OIHW", "NCHW")) + bias.reshape(1, -1, 1, 1)
    assert out.shape == (N, out_channels, H, W)
    assert jnp.allclose(out, ref, atol=1e-5, rtol=1e-5)

    print("KERNEL_OK")
</pallas_src>

<mosaic_0001>
module attributes {stable_mosaic.version = 11 : i64} {
  func.func @_conv_kernel(%arg0: i32, %arg1: memref<32x64xf32, #tpu.memory_space<vmem>>, %arg2: memref<64x384xf32, #tpu.memory_space<vmem>>, %arg3: memref<1x128xf32, #tpu.memory_space<vmem>>, %arg4: memref<32x128xf32, #tpu.memory_space<vmem>>) attributes {dimension_semantics = [#tpu.dimension_semantics<parallel>], iteration_bounds = array<i64: 1>, scalar_prefetch = 0 : i64, scratch_operands = 0 : i64, tpu.core_type = #tpu.core_type<tc>, window_params = [{transform_indices = @transform_0, window_bounds = array<i64: 32, 64>}, {pipeline_mode = #tpu.pipeline_mode<synchronous>, transform_indices = @transform_1, window_bounds = array<i64: 64, 384>}, {pipeline_mode = #tpu.pipeline_mode<synchronous>, transform_indices = @transform_2, window_bounds = array<i64: 1, 128>}, {transform_indices = @transform_3, window_bounds = array<i64: 32, 128>}]} {
    %c0 = arith.constant 0 : index
    %c0_0 = arith.constant 0 : index
    %0 = vector.load %arg1[%c0, %c0_0] : memref<32x64xf32, #tpu.memory_space<vmem>>, vector<32x64xf32>
    %c0_1 = arith.constant 0 : index
    %c0_2 = arith.constant 0 : index
    %1 = vector.load %arg2[%c0_1, %c0_2] : memref<64x384xf32, #tpu.memory_space<vmem>>, vector<64x384xf32>
    %cst = arith.constant dense<0.000000e+00> : vector<32x384xf32>
    %2 = tpu.matmul %0, %1, %cst {dimension_numbers = #tpu.dot_dimension_numbers<[1], [0], [0], [1], [0, 0, 1, 1], [], []>} : vector<32x64xf32>, vector<64x384xf32>, vector<32x384xf32> -> vector<32x384xf32>
    %c0_3 = arith.constant 0 : index
    %c0_4 = arith.constant 0 : index
    %3 = vector.load %arg3[%c0_3, %c0_4] : memref<1x128xf32, #tpu.memory_space<vmem>>, vector<1x128xf32>
    %4 = vector.shape_cast %3 : vector<1x128xf32> to vector<1x128xf32>
    %5 = vector.broadcast %4 : vector<1x128xf32> to vector<32x128xf32>
    %6 = tpu.iota {dimensions = array<i32: 0>} : vector<32x128xi32>
    %c15_i32 = arith.constant 15 : i32
    %7 = vector.broadcast %c15_i32 : i32 to vector<32x128xi32>
    %8 = arith.andi %6, %7 : vector<32x128xi32>
    %9 = vector.extract_strided_slice %2 {offsets = [0, 0], sizes = [32, 128], strides = [1, 1]} : vector<32x384xf32> to vector<32x128xf32>
    %c1_i32 = arith.constant 1 : i32
    %10 = tpu.dynamic_rotate %9 by %c1_i32 dim 0 : vector<32x128xf32>, i32 -> vector<32x128xf32>
    %c1_i32_5 = arith.constant 1 : i32
    %11 = vector.broadcast %c1_i32_5 : i32 to vector<32x128xi32>
    %12 = arith.cmpi sge, %8, %11 : vector<32x128xi32>
    %cst_6 = arith.constant 0.000000e+00 : f32
    %13 = vector.broadcast %cst_6 : f32 to vector<32x128xf32>
    %14 = arith.select %12, %10, %13 : vector<32x128xi1>, vector<32x128xf32>
    %15 = arith.addf %5, %14 : vector<32x128xf32>
    %16 = vector.extract_strided_slice %2 {offsets = [0, 128], sizes = [32, 128], strides = [1, 1]} : vector<32x384xf32> to vector<32x128xf32>
    %17 = arith.addf %15, %16 : vector<32x128xf32>
    %18 = vector.extract_strided_slice %2 {offsets = [0, 256], sizes = [32, 128], strides = [1, 1]} : vector<32x384xf32> to vector<32x128xf32>
    %c31_i32 = arith.constant 31 : i32
    %19 = tpu.dynamic_rotate %18 by %c31_i32 dim 0 : vector<32x128xf32>, i32 -> vector<32x128xf32>
    %c14_i32 = arith.constant 14 : i32
    %20 = vector.broadcast %c14_i32 : i32 to vector<32x128xi32>
    %21 = arith.cmpi sle, %8, %20 : vector<32x128xi32>
    %cst_7 = arith.constant 0.000000e+00 : f32
    %22 = vector.broadcast %cst_7 : f32 to vector<32x128xf32>
    %23 = arith.select %21, %19, %22 : vector<32x128xi1>, vector<32x128xf32>
    %24 = arith.addf %17, %23 : vector<32x128xf32>
    %c0_8 = arith.constant 0 : index
    %c0_9 = arith.constant 0 : index
    %25 = vector.load %arg4[%c0_8, %c0_9] : memref<32x128xf32, #tpu.memory_space<vmem>>, vector<32x128xf32>
    tpu.vector_store %arg4[%c0_8, %c0_9], %24 {strides = array<i32>} : memref<32x128xf32, #tpu.memory_space<vmem>>, vector<32x128xf32>,
    return
  }
  func.func @transform_0(%arg0: i32) -> (i32, i32) {
    %c0_i32 = arith.constant 0 : i32
    %c0_i32_0 = arith.constant 0 : i32
    return %arg0, %c0_i32 : i32, i32
  }
  func.func @transform_1(%arg0: i32) -> (i32, i32) {
    %c0_i32 = arith.constant 0 : i32
    %c0_i32_0 = arith.constant 0 : i32
    %c0_i32_1 = arith.constant 0 : i32
    return %c0_i32, %c0_i32_0 : i32, i32
  }
  func.func @transform_2(%arg0: i32) -> (i32, i32) {
    %c0_i32 = arith.constant 0 : i32
    %c0_i32_0 = arith.constant 0 : i32
    %c0_i32_1 = arith.constant 0 : i32
    return %c0_i32, %c0_i32_0 : i32, i32
  }
  func.func @transform_3(%arg0: i32) -> (i32, i32) {
    %c0_i32 = arith.constant 0 : i32
    %c0_i32_0 = arith.constant 0 : i32
    return %arg0, %c0_i32 : i32, i32
  }
}

</mosaic_0001>

<llo_original>
// kernel: simple_net_forward.1
$region0: #{simple_net_forward.1}
  #allocation0 [shape = 'u32[]', space=smem, size = 0x4, offset = 0x4, fixed_abs, tag = 'smem constant byte address 0x4 - core index']
  #allocation1 [shape = 'u32[144,128]{1,0:T(1,128)}', space=vmem, size = 0x12000, scoped, tag = 'internal scratch']
  %s0 = inlined_call_operand.vmem [shape: f32[32,64], index: 0, kind: input, shape index: {}]
  %s1 = inlined_call_operand.vmem [shape: f32[64,384], index: 1, kind: input, shape index: {}]
  %s2 = inlined_call_operand.vmem [shape: f32[1,128], index: 2, kind: input, shape index: {}]
  %s3 = inlined_call_operand.vmem [shape: f32[32,128], index: 3, kind: output, shape index: {}]
  %s4 = sld [smem:[#allocation0]]
  $region22: #{simple_net_forward.1} parent=0
    _
  %s6 = ssub.s32 1, %s4
  %s7 = scalar_select 0, %s6, %s4
  // Predicated region
  $region2: #{simple_net_forward.1} parent=0 // pred_check
    _
  $region3: #{simple_net_forward.1} parent=0 // pred_check_branch
    %9 = sbr.rel (0) target = $region5
  $region4: #{simple_net_forward.1} parent=0 // pred_region
    _
  $region5: #{simple_net_forward.1} parent=0 // pred_fallthru
    _
  // Predicated region
  $region6: #{simple_net_forward.1} parent=0 // pred_check
    _
  $region7: #{simple_net_forward.1} parent=0 // pred_check_branch
    %11 = sbr.rel (0) target = $region9
  $region8: #{simple_net_forward.1} parent=0 // pred_region
    _
  $region9: #{simple_net_forward.1} parent=0 // pred_fallthru
    _
  // Predicated region
  $region10: #{simple_net_forward.1} parent=0 // pred_check
    _
  $region11: #{simple_net_forward.1} parent=0 // pred_check_branch
    %13 = sbr.rel (0) target = $region13
  $region12: #{simple_net_forward.1} parent=0 // pred_region
    _
  $region13: #{simple_net_forward.1} parent=0 // pred_fallthru
    _
  %v14 = vld [vmem:[%s0] sm:$0xff]
  %v15 = vld [vmem:[%s0 + $0x8] sm:$0xff]
  %v16 = vld [vmem:[%s0 + $0x10] sm:$0xff]
  %v17 = vld [vmem:[%s0 + $0x18] sm:$0xff]
  %v18 = vld [vmem:[%s1] sm:$0xff]
  %v19 = vld [vmem:[%s1 + $0x8] sm:$0xff]
  %v20 = vld [vmem:[%s1 + $0x10] sm:$0xff]
  %v21 = vld [vmem:[%s1 + $0x18] sm:$0xff]
  %v22 = vld [vmem:[%s1 + $0x20] sm:$0xff]
  %v23 = vld [vmem:[%s1 + $0x28] sm:$0xff]
  %v24 = vld [vmem:[%s1 + $0x30] sm:$0xff]
  %v25 = vld [vmem:[%s1 + $0x38] sm:$0xff]
  %v26 = vld [vmem:[%s1 + $0x40] sm:$0xff]
  %v27 = vld [vmem:[%s1 + $0x48] sm:$0xff]
  %v28 = vld [vmem:[%s1 + $0x50] sm:$0xff]
  %v29 = vld [vmem:[%s1 + $0x58] sm:$0xff]
  %v30 = vld [vmem:[%s1 + $0x60] sm:$0xff]
  %v31 = vld [vmem:[%s1 + $0x68] sm:$0xff]
  %v32 = vld [vmem:[%s1 + $0x70] sm:$0xff]
  %v33 = vld [vmem:[%s1 + $0x78] sm:$0xff]
  %v34 = vld [vmem:[%s1 + $0x80] sm:$0xff]
  %v35 = vld [vmem:[%s1 + $0x88] sm:$0xff]
  %v36 = vld [vmem:[%s1 + $0x90] sm:$0xff]
  %v37 = vld [vmem:[%s1 + $0x98] sm:$0xff]
  %v38 = vld [vmem:[%s1 + $0xa0] sm:$0xff]
  %v39 = vld [vmem:[%s1 + $0xa8] sm:$0xff]
  %v40 = vld [vmem:[%s1 + $0xb0] sm:$0xff]
  %v41 = vld [vmem:[%s1 + $0xb8] sm:$0xff]
  %vm42 = vcmask 523264
  %v44 = vsel %vm42, %v14, 0
  %v47 = vsel %vm42, %v15, 0
  %v50 = vsel %vm42, %v16, 0
  %v53 = vsel %vm42, %v17, 0
  %55 = vmatprep.subr.mxu0 %v19
  %56 = vmatpush1.msra.mxu0 %v18
  %57 = vmatprep.subr.mxu0 %v22
  %58 = vmatpush1.msra.mxu0 %v21
  %59 = vmatprep.subr.mxu0 %v25
  %60 = vmatpush1.msra.mxu0 %v24
  %61 = vmatprep.subr.mxu0 %v28
  %62 = vmatpush1.msra.mxu0 %v27
  %63 = vmatprep.subr.mxu0 %v31
  %64 = vmatpush1.msra.mxu0 %v30
  %65 = vmatprep.subr.mxu0 %v34
  %66 = vmatpush1.msra.mxu0 %v33
  %67 = vmatprep.subr.mxu0 %v37
  %68 = vmatpush1.msra.mxu0 %v36
  %69 = vmatprep.subr.mxu0 %v40
  %70 = vmatpush1.msra.mxu0 %v39
  %71 = vmatprep.subr.mxu0 0.0
  %72 = vmatpush1.msra.mxu0 0.0
  %73 = vmatprep.subr.mxu0 0.0
  %74 = vmatpush1.msra.mxu0 0.0
  %75 = vmatprep.subr.mxu0 0.0
  %76 = vmatpush1.msra.mxu0 0.0
  %77 = vmatprep.subr.mxu0 0.0
  %78 = vmatpush1.msra.mxu0 0.0
  %79 = vmatprep.subr.mxu0 0.0
  %80 = vmatpush1.msra.mxu0 0.0
  %81 = vmatprep.subr.mxu0 0.0
  %82 = vmatpush1.msra.mxu0 0.0
  %83 = vmatprep.subr.mxu0 0.0
  %84 = vmatpush1.msra.mxu0 0.0
  %85 = vmatprep.subr.mxu0 0.0
  %86 = vmatpush1.msra.mxu0 0.0
  %87 = vmatprep.subr.mxu0 0.0
  %88 = vmatpush1.msra.mxu0 0.0
  %89 = vmatprep.subr.mxu0 0.0
  %90 = vmatpush1.msra.mxu0 0.0
  %91 = vmatprep.subr.mxu0 0.0
  %92 = vmatpush1.msra.mxu0 0.0
  %93 = vmatprep.subr.mxu0 0.0
  %94 = vmatpush1.msra.mxu0 0.0
  %95 = vmatprep.subr.mxu0 0.0
  %96 = vmatpush1.msra.mxu0 0.0
  %97 = vmatprep.subr.mxu0 0.0
  %98 = vmatpush1.msra.mxu0 0.0
  %99 = vmatprep.subr.mxu0 0.0
  %100 = vmatpush1.msra.mxu0 0.0
  %101 = vmatprep.subr.mxu0 0.0
  %102 = vmatpush1.msra.mxu0 0.0
  %103 = vmatprep.subr.mxu0 0.0
  %104 = vmatpush1.msra.mxu0 0.0
  %105 = vmatprep.subr.mxu0 0.0
  %106 = vmatpush1.msra.mxu0 0.0
  %107 = vmatprep.subr.mxu0 0.0
  %108 = vmatpush1.msra.mxu0 0.0
  %109 = vmatprep.subr.mxu0 0.0
  %110 = vmatpush1.msra.mxu0 0.0
  %111 = vmatprep.subr.mxu0 0.0
  %112 = vmatpush1.msra.mxu0 0.0
  %113 = vmatprep.subr.mxu0 0.0
  %114 = vmatpush1.msra.mxu0 0.0
  %115 = vmatprep.subr.mxu0 0.0
  %116 = vmatpush1.msra.mxu0 0.0
  %117 = vmatprep.subr.mxu0 0.0
  %118 = vmatpush1.msra.mxu0 0.0
  %119 = vmatprep.mubr.f32.mxu0 0.0
  %120 = vmatmul.mubr.f32.gmra.mrb[0].mxu0 %v44
  %v121 = vpop.f32.mrb[0].mxu0
  %v122 = vadd.f32 0.0, %v121
  %v123 = vpop.f32.mrb[0].mxu0
  %v124 = vadd.f32 0.0, %v123
  %125 = vmatprep.mubr.f32.mxu0 0.0
  %126 = vmatmul.mubr.f32.gmra.mrb[0].mxu0 %v47
  %v127 = vpop.f32.mrb[0].mxu0
  %v128 = vadd.f32 0.0, %v127
  %v129 = vpop.f32.mrb[0].mxu0
  %v130 = vadd.f32 0.0, %v129
  %131 = vmatprep.mubr.f32.mxu0 0.0
  %132 = vmatmul.mubr.f32.gmra.mrb[0].mxu0 %v50
  %v133 = vpop.f32.mrb[0].mxu0
  %v134 = vadd.f32 0.0, %v133
  %v135 = vpop.f32.mrb[0].mxu0
  %v136 = vadd.f32 0.0, %v135
  %137 = vmatprep.mubr.f32.mxu0 0.0
  %138 = vmatmul.mubr.f32.gmra.mrb[0].mxu0 %v53
  %v139 = vpop.f32.mrb[0].mxu0
  %v140 = vadd.f32 0.0, %v139
  %v141 = vpop.f32.mrb[0].mxu0
  %v142 = vadd.f32 0.0, %v141
  %143 = vdwg.mxu0
  %144 = vmatprep.subr.mxu0 0.0
  %145 = vmatpush1.msra.mxu0 %v20
  %146 = vmatprep.subr.mxu0 0.0
  %147 = vmatpush1.msra.mxu0 %v23
  %148 = vmatprep.subr.mxu0 0.0
  %149 = vmatpush1.msra.mxu0 %v26
  %150 = vmatprep.subr.mxu0 0.0
  %151 = vmatpush1.msra.mxu0 %v29
  %152 = vmatprep.subr.mxu0 0.0
  %153 = vmatpush1.msra.mxu0 %v32
  %154 = vmatprep.subr.mxu0 0.0
  %155 = vmatpush1.msra.mxu0 %v35
  %156 = vmatprep.subr.mxu0 0.0
  %157 = vmatpush1.msra.mxu0 %v38
  %158 = vmatprep.subr.mxu0 0.0
  %159 = vmatpush1.msra.mxu0 %v41
  %160 = vmatprep.subr.mxu0 0.0
  %161 = vmatpush1.msra.mxu0 0.0
  %162 = vmatprep.subr.mxu0 0.0
  %163 = vmatpush1.msra.mxu0 0.0
  %164 = vmatprep.subr.mxu0 0.0
  %165 = vmatpush1.msra.mxu0 0.0
  %166 = vmatprep.subr.mxu0 0.0
  %167 = vmatpush1.msra.mxu0 0.0
  %168 = vmatprep.subr.mxu0 0.0
  %169 = vmatpush1.msra.mxu0 0.0
  %170 = vmatprep.subr.mxu0 0.0
  %171 = vmatpush1.msra.mxu0 0.0
  %172 = vmatprep.subr.mxu0 0.0
  %173 = vmatpush1.msra.mxu0 0.0
  %174 = vmatprep.subr.mxu0 0.0
  %175 = vmatpush1.msra.mxu0 0.0
  %176 = vmatprep.subr.mxu0 0.0
  %177 = vmatpush1.msra.mxu0 0.0
  %178 = vmatprep.subr.mxu0 0.0
  %179 = vmatpush1.msra.mxu0 0.0
  %180 = vmatprep.subr.mxu0 0.0
  %181 = vmatpush1.msra.mxu0 0.0
  %182 = vmatprep.subr.mxu0 0.0
  %183 = vmatpush1.msra.mxu0 0.0
  %184 = vmatprep.subr.mxu0 0.0
  %185 = vmatpush1.msra.mxu0 0.0
  %186 = vmatprep.subr.mxu0 0.0
  %187 = vmatpush1.msra.mxu0 0.0
  %188 = vmatprep.subr.mxu0 0.0
  %189 = vmatpush1.msra.mxu0 0.0
  %190 = vmatprep.subr.mxu0 0.0
  %191 = vmatpush1.msra.mxu0 0.0
  %192 = vmatprep.subr.mxu0 0.0
  %193 = vmatpush1.msra.mxu0 0.0
  %194 = vmatprep.subr.mxu0 0.0
  %195 = vmatpush1.msra.mxu0 0.0
  %196 = vmatprep.subr.mxu0 0.0
  %197 = vmatpush1.msra.mxu0 0.0
  %198 = vmatprep.subr.mxu0 0.0
  %199 = vmatpush1.msra.mxu0 0.0
  %200 = vmatprep.subr.mxu0 0.0
  %201 = vmatpush1.msra.mxu0 0.0
  %202 = vmatprep.subr.mxu0 0.0
  %203 = vmatpush1.msra.mxu0 0.0
  %204 = vmatprep.subr.mxu0 0.0
  %205 = vmatpush1.msra.mxu0 0.0
  %206 = vmatprep.subr.mxu0 0.0
  %207 = vmatpush1.msra.mxu0 0.0
  %208 = vmatprep.mubr.f32.mxu0 0.0
  %209 = vmatmul.mubr.f32.gmra.mrb[0].mxu0 %v44
  %v210 = vpop.f32.mrb[0].mxu0
  %v211 = vadd.f32 0.0, %v210
  %v212 = vpop.f32.mrb[0].mxu0
  %213 = vmatprep.mubr.f32.mxu0 0.0
  %214 = vmatmul.mubr.f32.gmra.mrb[0].mxu0 %v47
  %v215 = vpop.f32.mrb[0].mxu0
  %v216 = vadd.f32 0.0, %v215
  %v217 = vpop.f32.mrb[0].mxu0
  %218 = vmatprep.mubr.f32.mxu0 0.0
  %219 = vmatmul.mubr.f32.gmra.mrb[0].mxu0 %v50
  %v220 = vpop.f32.mrb[0].mxu0
  %v221 = vadd.f32 0.0, %v220
  %v222 = vpop.f32.mrb[0].mxu0
  %223 = vmatprep.mubr.f32.mxu0 0.0
  %224 = vmatmul.mubr.f32.gmra.mrb[0].mxu0 %v53
  %v225 = vpop.f32.mrb[0].mxu0
  %v226 = vadd.f32 0.0, %v225
  %v227 = vpop.f32.mrb[0].mxu0
  %228 = vdwg.mxu0
  %v229 = vld [vmem:[%s2] sm:$0x1]
  %v231 = vlaneseq
  %v232 = vshrl.u32 %v231, 7
  %v233 = vsub.s32 0, %v232
  %v234 = vrot.slane %v229, %v233
  %v236 = vlaneseq
  %v237 = vshrl.u32 %v236, 7
  %v238 = vadd.s32 %v237, 8
  %v239 = vadd.s32 %v237, 16
  %v240 = vadd.s32 %v237, 24
  %v241 = vand.u32 %v237, 15
  %v242 = vand.u32 %v238, 15
  %v243 = vand.u32 %v239, 15
  %v244 = vand.u32 %v240, 15
  %v245 = vrot.slane %v122, 7
  %v246 = vrot.slane %v128, 7
  %v247 = vrot.slane %v134, 7
  %v248 = vrot.slane %v140, 7
  %vm249 = vcmp.lt.s32.totalorder %v237, 1
  %v250 = vsel %vm249, %v247, %v248
  %v251 = vsel %vm249, %v246, %v247
  %v252 = vsel %vm249, %v245, %v246
  %v253 = vsel %vm249, %v248, %v245
  %vm254 = vcmp.ge.s32.totalorder %v241, 1
  %vm255 = vcmp.ge.s32.totalorder %v242, 1
  %vm256 = vcmp.ge.s32.totalorder %v243, 1
  %vm257 = vcmp.ge.s32.totalorder %v244, 1
  %v258 = vsel %vm254, %v253, 0.0
  %v259 = vsel %vm255, %v252, 0.0
  %v260 = vsel %vm256, %v251, 0.0
  %v261 = vsel %vm257, %v250, 0.0
  %v262 = vadd.f32 %v234, %v258
  %v263 = vadd.f32 %v234, %v259
  %v264 = vadd.f32 %v234, %v260
  %v265 = vadd.f32 %v234, %v261
  %v266 = vadd.f32 %v262, %v124
  %v267 = vadd.f32 %v263, %v130
  %v268 = vadd.f32 %v264, %v136
  %v269 = vadd.f32 %v265, %v142
  %v270 = vrot.slane %v211, 1
  %v271 = vrot.slane %v216, 1
  %v272 = vrot.slane %v221, 1
  %v273 = vrot.slane %v226, 1
  %vm274 = vcmp.lt.s32.totalorder %v237, 7
  %v275 = vsel %vm274, %v272, %v273
  %v276 = vsel %vm274, %v271, %v272
  %v277 = vsel %vm274, %v270, %v271
  %v278 = vsel %vm274, %v273, %v270
  %vm279 = vcmp.le.s32.totalorder %v241, 14
  %vm280 = vcmp.le.s32.totalorder %v242, 14
  %vm281 = vcmp.le.s32.totalorder %v243, 14
  %vm282 = vcmp.le.s32.totalorder %v244, 14
  %v283 = vsel %vm279, %v277, 0.0
  %v284 = vsel %vm280, %v276, 0.0
  %v285 = vsel %vm281, %v275, 0.0
  %v286 = vsel %vm282, %v278, 0.0
  %v287 = vadd.f32 %v266, %v283
  %v288 = vadd.f32 %v267, %v284
  %v289 = vadd.f32 %v268, %v285
  %v290 = vadd.f32 %v269, %v286
  %291 = vst [vmem:[%s3] sm:$0xff] %v287
  %292 = vst [vmem:[%s3 + $0x8] sm:$0xff] %v288
  %293 = vst [vmem:[%s3 + $0x10] sm:$0xff] %v289
  %294 = vst [vmem:[%s3 + $0x18] sm:$0xff] %v290
  // Predicated region
  $region14: #{simple_net_forward.1} parent=0 // pred_check
    _
  $region15: #{simple_net_forward.1} parent=0 // pred_check_branch
    %296 = sbr.rel (0) target = $region17
  $region16: #{simple_net_forward.1} parent=0 // pred_region
    _
  $region17: #{simple_net_forward.1} parent=0 // pred_fallthru
    _
  // Predicated region
  $region18: #{simple_net_forward.1} parent=0 // pred_check
    _
  $region19: #{simple_net_forward.1} parent=0 // pred_check_branch
    %298 = sbr.rel (0) target = $region21
  $region20: #{simple_net_forward.1} parent=0 // pred_region
    _
  $region21: #{simple_net_forward.1} parent=0 // pred_fallthru
    _

</llo_original>
